<compile_context>
chip_gen: v5e
topology: v5e:2x2
jax: 0.10.0
libtpu: 0.0.40
codegen_flags: <defaults>
</compile_context>

<pallas_src>
import jax
import jax.numpy as jnp
from jax.experimental import pallas as pl
from jax.experimental.pallas import tpu as pltpu


_MAX_ROWS_PER_TILE = 2048           # 2048 * 128 * 4B = 1 MiB per f32 buffer
_VMEM_LIMIT_BYTES = 32 * 1024 * 1024


# ----------------------------------------------------------------------------
# Pallas kernels
# ----------------------------------------------------------------------------
def _stats_kernel(x_ref, acc_ref):
    """Accumulate lane-wise partial (sum, sum of squares) over HW tiles.

    x_ref:   (rows_tile, 128) tile of one sample (leading sample dim squeezed).
    acc_ref: (2, 128) resident accumulator; row 0 = sum, row 1 = sum of squares.
    """
    t = pl.program_id(1)

    @pl.when(t == 0)
    def _():
        acc_ref[...] = jnp.zeros_like(acc_ref)

    x = x_ref[...].astype(jnp.float32)
    s = jnp.sum(x, axis=0, keepdims=True)        # (1, 128) lane-wise partial sum
    ss = jnp.sum(x * x, axis=0, keepdims=True)   # (1, 128) lane-wise partial sumsq
    acc_ref[...] += jnp.concatenate([s, ss], axis=0)


def _apply_kernel(sb_ref, x_ref, g_ref, b_ref, o_ref):
    """Fused normalize + SPADE modulation: out = (x*scale + shift)*(1+gamma) + beta.

    sb_ref:            (N, 2) f32 in SMEM; [n, 0]=scale, [n, 1]=shift (per sample).
    x/g/b/o refs:      (rows_tile, 128) lane-dense tiles.
    """
    n = pl.program_id(0)
    scale = sb_ref[n, 0]
    shift = sb_ref[n, 1]

    x = x_ref[...].astype(jnp.float32)
    g = g_ref[...].astype(jnp.float32)
    b = b_ref[...].astype(jnp.float32)

    xn = x * scale + shift
    o_ref[...] = (xn * (1.0 + g) + b).astype(o_ref.dtype)


# ----------------------------------------------------------------------------
# Layout helpers
# ----------------------------------------------------------------------------
def _choose_tiling(f):
    """Pick (rows_tile, padded_rows) for a per-sample element count f."""
    r0 = -(-f // 128)                       # ceil(f / 128)
    if r0 <= _MAX_ROWS_PER_TILE:
        return r0, r0                        # single tile == full extent (always legal)
    rows_tile = _MAX_ROWS_PER_TILE           # multiple of 8 -> legal sublane block
    r_pad = -(-r0 // rows_tile) * rows_tile
    return rows_tile, r_pad


def _flatten_pad(a, f, r_pad):
    """(N, ...) -> zero-padded lane-dense (N, r_pad, 128)."""
    n = a.shape[0]
    flat = a.reshape(n, f)
    pad = r_pad * 128 - f
    if pad:
        flat = jnp.pad(flat, ((0, 0), (0, pad)))
    return flat.reshape(n, r_pad, 128)


# ----------------------------------------------------------------------------
# Fused LayerNorm2d(affine=False) + SPADE modulation
# ----------------------------------------------------------------------------
def layer_norm_2d_spade(x, gamma_map, beta_map, eps=1e-5):
    """x, gamma_map, beta_map: (N, C, H, W). Returns (N, C, H, W)."""
    n_batch, c, h, w = x.shape
    f = c * h * w
    rows_tile, r_pad = _choose_tiling(f)
    num_tiles = r_pad // rows_tile

    x_t = _flatten_pad(x, f, r_pad)
    g_t = _flatten_pad(gamma_map.astype(jnp.float32), f, r_pad)
    b_t = _flatten_pad(beta_map.astype(jnp.float32), f, r_pad)

    # ---- pass 1: streaming per-sample (sum, sum of squares) -----------------
    stats = pl.pallas_call(
        _stats_kernel,
        grid=(n_batch, num_tiles),
        in_specs=[pl.BlockSpec((None, rows_tile, 128), lambda n, t: (n, t, 0))],
        out_specs=pl.BlockSpec((None, 2, 128), lambda n, t: (n, 0, 0)),
        out_shape=jax.ShapeDtypeStruct((n_batch, 2, 128), jnp.float32),
        compiler_params=pltpu.CompilerParams(
            dimension_semantics=("parallel", "arbitrary"),
            vmem_limit_bytes=_VMEM_LIMIT_BYTES,
        ),
    )(x_t)

    # ---- tiny (N,)-sized fold to per-sample scale / shift --------------------
    s = jnp.sum(stats[:, 0, :], axis=-1)
    ss = jnp.sum(stats[:, 1, :], axis=-1)
    n_elem = float(f)
    mean = s / n_elem
    # single-pass unbiased variance; f32 accumulation, clamp against cancellation
    var = (ss - s * s / n_elem) / max(n_elem - 1.0, 1.0)
    var = jnp.maximum(var, 0.0)
    std = jnp.sqrt(var)
    scale = 1.0 / (std + eps)                 # torch semantics: eps added to std
    shift = -mean * scale
    sb = jnp.stack([scale, shift], axis=-1).astype(jnp.float32)   # (N, 2)

    # ---- pass 2: fused normalize + modulate ----------------------------------
    out_t = pl.pallas_call(
        _apply_kernel,
        grid=(n_batch, num_tiles),
        in_specs=[
            pl.BlockSpec(memory_space=pltpu.MemorySpace.SMEM),                 # (N, 2) scalars
            pl.BlockSpec((None, rows_tile, 128), lambda n, t: (n, t, 0)),       # x
            pl.BlockSpec((None, rows_tile, 128), lambda n, t: (n, t, 0)),       # gamma
            pl.BlockSpec((None, rows_tile, 128), lambda n, t: (n, t, 0)),       # beta
        ],
        out_specs=pl.BlockSpec((None, rows_tile, 128), lambda n, t: (n, t, 0)),
        out_shape=jax.ShapeDtypeStruct((n_batch, r_pad, 128), x.dtype),
        compiler_params=pltpu.CompilerParams(
            dimension_semantics=("parallel", "parallel"),
            vmem_limit_bytes=_VMEM_LIMIT_BYTES,
        ),
    )(sb, x_t, g_t, b_t)

    out = out_t.reshape(n_batch, r_pad * 128)[:, :f].reshape(n_batch, c, h, w)
    return out


# ----------------------------------------------------------------------------
# SPADE conditional branch (stays in plain JAX / XLA)
# ----------------------------------------------------------------------------
def _hyper_conv2d(x, weight, bias, padding):
    """Per-sample (hyper) conv: x (N,Ci,H,W), weight (N,Co,Ci,k,k), bias (N,Co)."""
    def one(xi, wi, bi):
        y = jax.lax.conv_general_dilated(
            xi[None], wi, window_strides=(1, 1),
            padding=[(padding, padding), (padding, padding)],
            dimension_numbers=("NCHW", "OIHW", "NCHW"))
        return y[0] + bi[:, None, None]
    return jax.vmap(one)(x, weight, bias)


def hyper_spatially_adaptive_norm(x, cond_input, conv_weight, conv_bias, eps=1e-5):
    """HyperSpatiallyAdaptiveNorm.forward(x, cond_input, norm_weights=(w, b))."""
    n_batch, c, h, w = x.shape
    # TODO(synk): nearest interpolation + per-sample hyper conv are kept in plain
    # JAX/XLA (no clean Pallas win for a tiny dynamic-weight 3x3 conv); only the
    # HBM-bandwidth-bound normalize + modulate path runs as Pallas kernels.
    label = jax.image.resize(
        cond_input, (cond_input.shape[0], cond_input.shape[1], h, w), method="nearest")
    affine = _hyper_conv2d(label, conv_weight, conv_bias,
                           padding=conv_weight.shape[-1] // 2)
    gamma, beta = affine[:, :c], affine[:, c:]
    return layer_norm_2d_spade(x, gamma, beta, eps=eps)


# ----------------------------------------------------------------------------
# Pure-JAX reference mirroring the PyTorch forward
# ----------------------------------------------------------------------------
def _reference(x, cond_input, conv_weight, conv_bias, eps=1e-5):
    n_batch, c, h, w = x.shape
    label = jax.image.resize(
        cond_input, (cond_input.shape[0], cond_input.shape[1], h, w), method="nearest")
    affine = _hyper_conv2d(label, conv_weight, conv_bias,
                           padding=conv_weight.shape[-1] // 2)
    gamma, beta = affine[:, :c], affine[:, c:]

    flat = x.reshape(n_batch, -1).astype(jnp.float32)
    mean = flat.mean(axis=1)
    var = jnp.sum((flat - mean[:, None]) ** 2, axis=1) / max(flat.shape[1] - 1, 1)
    std = jnp.sqrt(var)
    xn = (x.astype(jnp.float32) - mean[:, None, None, None]) / (std[:, None, None, None] + eps)
    return xn * (1.0 + gamma) + beta


if __name__ == "__main__":
    key = jax.random.PRNGKey(0)
    kx, kc, kw, kb = jax.random.split(key, 4)

    N, C, H, W = 2, 4, 16, 16            # input feature map
    Cc, Hc, Wc, K = 8, 8, 8, 3           # conditional map channels/spatial, conv kernel

    x = jax.random.normal(kx, (N, C, H, W), dtype=jnp.float32)
    cond = jax.random.normal(kc, (N, Cc, Hc, Wc), dtype=jnp.float32)
    # per-sample hyper conv weights/biases (as supplied via norm_weights in PyTorch)
    w = 0.1 * jax.random.normal(kw, (N, 2 * C, Cc, K, K), dtype=jnp.float32)
    b = 0.1 * jax.random.normal(kb, (N, 2 * C), dtype=jnp.float32)

    out = hyper_spatially_adaptive_norm(x, cond, w, b, eps=1e-5)
    out = jax.block_until_ready(out)

    ref = _reference(x, cond, w, b, eps=1e-5)
    assert out.shape == (N, C, H, W)
    assert jnp.allclose(out, ref, atol=1e-4, rtol=1e-4), "mismatch vs reference"

    print("KERNEL_OK")
</pallas_src>

<mosaic_0001>
module attributes {stable_mosaic.version = 11 : i64} {
  func.func @_stats_kernel(%arg0: i32, %arg1: i32, %arg2: memref<1x8x128xf32, #tpu.memory_space<vmem>>, %arg3: memref<1x2x128xf32, #tpu.memory_space<vmem>>) attributes {dimension_semantics = [#tpu.dimension_semantics<parallel>, #tpu.dimension_semantics<arbitrary>], iteration_bounds = array<i64: 2, 1>, scalar_prefetch = 0 : i64, scratch_operands = 0 : i64, tpu.core_type = #tpu.core_type<tc>, window_params = [{transform_indices = @transform_0, window_bounds = array<i64: 1, 8, 128>}, {transform_indices = @transform_1, window_bounds = array<i64: 1, 2, 128>}]} {
    %c0_i32 = arith.constant 0 : i32
    %0 = arith.cmpi eq, %arg1, %c0_i32 : i32
    %1 = arith.extui %0 : i1 to i32
    %c0_i32_0 = arith.constant 0 : i32
    %2 = arith.cmpi ne, %1, %c0_i32_0 : i32
    scf.if %2 {
      %cst_10 = arith.constant 0.000000e+00 : f32
      %17 = vector.broadcast %cst_10 : f32 to vector<2x128xf32>
      %c0_11 = arith.constant 0 : index
      %c0_12 = arith.constant 0 : index
      %c0_13 = arith.constant 0 : index
      %18 = vector.load %arg3[%c0_11, %c0_12, %c0_13] : memref<1x2x128xf32, #tpu.memory_space<vmem>>, vector<1x2x128xf32>
      %19 = vector.shape_cast %18 : vector<1x2x128xf32> to vector<2x128xf32>
      %20 = vector.shape_cast %17 : vector<2x128xf32> to vector<1x2x128xf32>
      tpu.vector_store %arg3[%c0_11, %c0_12, %c0_13], %20 {strides = array<i32>} : memref<1x2x128xf32, #tpu.memory_space<vmem>>, vector<1x2x128xf32>,
    } else {
    }
    %c0 = arith.constant 0 : index
    %c0_1 = arith.constant 0 : index
    %c0_2 = arith.constant 0 : index
    %3 = vector.load %arg2[%c0, %c0_1, %c0_2] : memref<1x8x128xf32, #tpu.memory_space<vmem>>, vector<1x8x128xf32>
    %4 = vector.shape_cast %3 : vector<1x8x128xf32> to vector<8x128xf32>
    %cst = arith.constant dense<0.000000e+00> : vector<128xf32>
    %5 = vector.multi_reduction <add>, %4, %cst [0] : vector<8x128xf32> to vector<128xf32>
    %6 = vector.shape_cast %5 : vector<128xf32> to vector<1x128xf32>
    %7 = arith.mulf %4, %4 : vector<8x128xf32>
    %cst_3 = arith.constant dense<0.000000e+00> : vector<128xf32>
    %8 = vector.multi_reduction <add>, %7, %cst_3 [0] : vector<8x128xf32> to vector<128xf32>
    %9 = vector.shape_cast %8 : vector<128xf32> to vector<1x128xf32>
    %c0_4 = arith.constant 0 : index
    %c0_5 = arith.constant 0 : index
    %c0_6 = arith.constant 0 : index
    %10 = vector.load %arg3[%c0_4, %c0_5, %c0_6] : memref<1x2x128xf32, #tpu.memory_space<vmem>>, vector<1x2x128xf32>
    %11 = vector.shape_cast %10 : vector<1x2x128xf32> to vector<2x128xf32>
    %12 = tpu.concatenate %6, %9 in 0 : vector<1x128xf32>, vector<1x128xf32> -> vector<2x128xf32>
    %13 = arith.addf %11, %12 : vector<2x128xf32>
    %c0_7 = arith.constant 0 : index
    %c0_8 = arith.constant 0 : index
    %c0_9 = arith.constant 0 : index
    %14 = vector.load %arg3[%c0_7, %c0_8, %c0_9] : memref<1x2x128xf32, #tpu.memory_space<vmem>>, vector<1x2x128xf32>
    %15 = vector.shape_cast %14 : vector<1x2x128xf32> to vector<2x128xf32>
    %16 = vector.shape_cast %13 : vector<2x128xf32> to vector<1x2x128xf32>
    tpu.vector_store %arg3[%c0_7, %c0_8, %c0_9], %16 {strides = array<i32>} : memref<1x2x128xf32, #tpu.memory_space<vmem>>, vector<1x2x128xf32>,
    return
  }
  func.func @transform_0(%arg0: i32, %arg1: i32) -> (i32, i32, i32) {
    %c0_i32 = arith.constant 0 : i32
    %c0_i32_0 = arith.constant 0 : i32
    return %arg0, %arg1, %c0_i32 : i32, i32, i32
  }
  func.func @transform_1(%arg0: i32, %arg1: i32) -> (i32, i32, i32) {
    %c0_i32 = arith.constant 0 : i32
    %c0_i32_0 = arith.constant 0 : i32
    %c0_i32_1 = arith.constant 0 : i32
    return %arg0, %c0_i32, %c0_i32_0 : i32, i32, i32
  }
}

</mosaic_0001>

<llo_original>
// kernel: tpu_custom_call.1
$region0: #{tpu_custom_call.1}
  #allocation0 [shape = 'u32[]', space=smem, size = 0x4, offset = 0x4, fixed_abs, tag = 'smem constant byte address 0x4 - core index']
  #allocation1 [shape = 'u32[72,128]{1,0:T(1,128)}', space=vmem, size = 0x9000, scoped, tag = 'internal scratch']
  %s0 = inlined_call_operand.hbm [shape: f32[2,8,128], index: 0, kind: input, shape index: {}]
  %s1 = inlined_call_operand.hbm [shape: f32[2,2,128], index: 1, kind: output, shape index: {}]
  %s2 = sld [smem:[#allocation0]]
  $region45: #{tpu_custom_call.1} parent=0
    _
  %s4 = ssub.s32 1, %s2
  %s5 = scalar_select 0, %s4, %s2
  $region1: #{tpu_custom_call.1} parent=0
    #allocation2 [shape = 'u8[8192]{0}', space=vmem, size = 0x2000, scoped, tag = 'input window, operand 0']
    #allocation3 [shape = 's32[2]{0}', space=sflag, size = 0x8, scoped, tag = 'scoped memory for tpu_custom_call.1']
    #allocation4 [shape = 's32[2]{0}', space=sflag, size = 0x8, scoped, tag = 'scoped memory for tpu_custom_call.1']
    #allocation5 [shape = 'u8[2048]{0}', space=vmem, size = 0x800, scoped, tag = 'output window, operand 0']
    %6 = vsyncpa [#allocation3], 0
    %s7 = scalar_lea.sflag [#allocation3], 1
    %8 = vsyncpa %s7, 0
    %9 = vsyncpa [#allocation4], 0
    %s10 = scalar_lea.sflag [#allocation4], 1
    %11 = vsyncpa %s10, 0
    loop: start=0, step=1, limit=4
    $region2: #{tpu_custom_call.1} parent=1 // loop_pre_header
      _
    $region3: #{tpu_custom_call.1} parent=1 // loop_header
      %s13 = sphi 0, %s17
      %p14 = scmp.ge.s32.totalorder %s13, 4
      %s20 = sphi 0, %s32
      %s21 = sphi 0, %s28
      %s22 = sphi 0, %s20
      %s23 = sphi 0, %s21
      %s24 = sphi 0, %s22
      %s25 = sphi 0, %s23
      %s37 = sphi 0, %s39
      %s40 = sphi 0, %s37
      %s41 = sphi 0, %s40
      %s57 = sphi 0, %s41
      %s63 = sphi 0, %s65
      %s66 = sphi 0, %s63
      %s67 = sphi 0, %s66
      %s83 = sphi 0, %s67
    $region4: #{tpu_custom_call.1} parent=1 // loop_header_branch
      %16 = sbr.rel (%p14) target = $region8
    $region5: #{tpu_custom_call.1} parent=1 // loop_body
      %s18 = ssub.s32 %s13, 1
      %s19 = ssub.s32 %s13, 2
      %s26 = sadd.s32 1, %s21
      %p27 = scmp.ge.s32.totalorder %s26, 1
      %s28 = scalar_select %p27, 0, %s26
      %s29 = sadd.s32 1, %s20
      %s30 = scalar_select %p27, %s29, %s20
      %p31 = scmp.ge.s32.totalorder %s30, 2
      %s32 = scalar_select %p31, 0, %s30
      %s33 = ssub.s32 %s20, %s32
      %s34 = ssub.s32 %s21, %s28
      %s35 = sor.u32 %s33, %s34
      %p36 = scmp.eq.s32.totalorder %s35, 0
      %s38 = sadd.s32 %s37, 1
      %s39 = scalar_select %p36, %s37, %s38
      %p42 = pneg %p36
      %p43 = scmp.eq.s32.totalorder %s13, 1
      %p44 = por %p42, %p43
      %p45 = scmp.ne.s32.totalorder %s37, %s40
      %p46 = scmp.eq.s32.totalorder %s13, 0
      %p47 = por %p45, %p46
      %p48 = scmp.ne.s32.totalorder %s37, %s40
      %p49 = scmp.eq.s32.totalorder %s18, 1
      %p50 = por %p48, %p49
      %p51 = scmp.ne.s32.totalorder %s40, %s41
      %p52 = scmp.eq.s32.totalorder %s18, 0
      %p53 = por %p51, %p52
      %p54 = scmp.ne.s32.totalorder %s40, %s41
      %p55 = scmp.eq.s32.totalorder %s19, 1
      %p56 = por %p54, %p55
      %p58 = scmp.ne.s32.totalorder %s41, %s57
      %p59 = scmp.eq.s32.totalorder %s19, 0
      %p60 = por %p58, %p59
      %s61 = ssub.s32 %s20, %s32
      %p62 = scmp.eq.s32.totalorder %s61, 0
      %s64 = sadd.s32 %s63, 1
      %s65 = scalar_select %p62, %s63, %s64
      %p68 = pneg %p62
      %p69 = scmp.eq.s32.totalorder %s13, 1
      %p70 = por %p68, %p69
      %p71 = scmp.ne.s32.totalorder %s63, %s66
      %p72 = scmp.eq.s32.totalorder %s13, 0
      %p73 = por %p71, %p72
      %p74 = scmp.ne.s32.totalorder %s63, %s66
      %p75 = scmp.eq.s32.totalorder %s18, 1
      %p76 = por %p74, %p75
      %p77 = scmp.ne.s32.totalorder %s66, %s67
      %p78 = scmp.eq.s32.totalorder %s18, 0
      %p79 = por %p77, %p78
      %p80 = scmp.ne.s32.totalorder %s66, %s67
      %p81 = scmp.eq.s32.totalorder %s19, 1
      %p82 = por %p80, %p81
      %p84 = scmp.ne.s32.totalorder %s67, %s83
      %p85 = scmp.eq.s32.totalorder %s19, 0
      %p86 = por %p84, %p85
      %p87 = scmp.le.s32.totalorder 1, %s13
      %p88 = scmp.lt.s32.totalorder %s13, 3
      %p89 = pnand %p87, %p88
      %p90 = pneg %p89
      // Predicated region
      $region9: #{tpu_custom_call.1} parent=5 // pred_check
        _
      $region10: #{tpu_custom_call.1} parent=5 // pred_check_branch
        %92 = sbr.rel (%p89) target = $region12
      $region11: #{tpu_custom_call.1} parent=5 // pred_region
        %s93 = ssub.s32 %s13, 1
      $region12: #{tpu_custom_call.1} parent=5 // pred_fallthru
        _
      %p94 = scmp.lt.s32.totalorder %s13, 2
      // Predicated region
      $region13: #{tpu_custom_call.1} parent=5 // pred_check
        %p95 = pneg %p94
      $region14: #{tpu_custom_call.1} parent=5 // pred_check_branch
        %97 = sbr.rel (%p95) target = $region16
      $region15: #{tpu_custom_call.1} parent=5 // pred_region
        // Predicated region
        $region17: #{tpu_custom_call.1} parent=15 // pred_check
          %p98 = pneg %p47
        $region18: #{tpu_custom_call.1} parent=15 // pred_check_branch
          %100 = sbr.rel (%p98) target = $region20
        $region19: #{tpu_custom_call.1} parent=15 // pred_region
          %s101 = sand.u32 %s37, 1
          %s102 = scalar_lea.sflag [#allocation3], %s101
          %s103 = sand.u32 %s37, 1
          %s104 = smul.addr %s103, 8
          %s105 = scalar_lea.vmem [#allocation2], %s104
          %107 = vsyncadd %s102, 0
          %s108 = sadd.s32 %s21, %s20
          %s109 = smul.addr %s108, 8
          %s110 = scalar_lea.hbm %s0, %s109
          %s112 = sshll.u32 %s110, 4
          %s113 = int_to_ptr.hbm [resolvable:$true] %s112
          %s114 = sshll.u32 %s105, 4
          %s115 = int_to_ptr.vmem [resolvable:$true] %s114
          %117 = dma.hbm_to_vmem [thread:$0]  %s113, 128, %s115, %s102
        $region20: #{tpu_custom_call.1} parent=15 // pred_fallthru
          _
      $region16: #{tpu_custom_call.1} parent=5 // pred_fallthru
        _
      %p118 = scmp.le.s32.totalorder 1, %s13
      %p119 = scmp.lt.s32.totalorder %s13, 3
      %p120 = pnand %p118, %p119
      %p121 = pneg %p120
      // Predicated region
      $region21: #{tpu_custom_call.1} parent=5 // pred_check
        _
      $region22: #{tpu_custom_call.1} parent=5 // pred_check_branch
        %123 = sbr.rel (%p120) target = $region24
      $region23: #{tpu_custom_call.1} parent=5 // pred_region
        %s124 = ssub.s32 %s13, 1
        %s125 = sand.u32 %s40, 1
        %s126 = scalar_lea.sflag [#allocation3], %s125
        %s127 = sand.u32 %s40, 1
        %s128 = smul.addr %s127, 8
        %s129 = scalar_lea.vmem [#allocation2], %s128
        // Predicated region
        $region25: #{tpu_custom_call.1} parent=23 // pred_check
          %p130 = pneg %p53
        $region26: #{tpu_custom_call.1} parent=23 // pred_check_branch
          %132 = sbr.rel (%p130) target = $region28
        $region27: #{tpu_custom_call.1} parent=23 // pred_region
          %134 = dma.done %s126, 128
        $region28: #{tpu_custom_call.1} parent=23 // pred_fallthru
          _
        %s135 = sand.u32 %s40, 1
        %s136 = scalar_lea.sflag [#allocation3], %s135
        %s137 = sand.u32 %s40, 1
        %s138 = smul.addr %s137, 8
        %s139 = scalar_lea.vmem [#allocation2], %s138
        %p140 = pneg %p53
        %p141 = pneg %p50
        %p142 = pneg %p79
        %p143 = pneg %p76
        %s144 = sand.u32 %s66, 1
        %s145 = scalar_lea.sflag [#allocation4], %s144
        %s146 = sand.u32 %s66, 1
        %s147 = smul.addr %s146, 2
        %s148 = scalar_lea.vmem [#allocation5], %s147
        %p149 = scmp.eq.s32.totalorder %s23, 0
        // Predicated region
        $region29: #{tpu_custom_call.1} parent=23 // pred_check
          %p150 = pneg %p149
        $region30: #{tpu_custom_call.1} parent=23 // pred_check_branch
          %152 = sbr.rel (%p150) target = $region32
        $region31: #{tpu_custom_call.1} parent=23 // pred_region
          %153 = vst [vmem:[%s148] sm:$0x3] 0.0
        $region32: #{tpu_custom_call.1} parent=23 // pred_fallthru
          _
        %v154 = vld [vmem:[%s129] sm:$0xff]
        %v155 = vrot.slane %v154, 4
        %v156 = vadd.f32 %v154, %v155
        %v157 = vrot.slane %v156, 2
        %v158 = vadd.f32 %v156, %v157
        %v159 = vrot.slane %v158, 1
        %v160 = vadd.f32 %v158, %v159
        %v161 = vmul.f32 %v154, %v154
        %v162 = vrot.slane %v161, 4
        %v163 = vadd.f32 %v161, %v162
        %v164 = vrot.slane %v163, 2
        %v165 = vadd.f32 %v163, %v164
        %v166 = vrot.slane %v165, 1
        %v167 = vadd.f32 %v165, %v166
        %v168 = vld [vmem:[%s148] sm:$0x3]
        %vm169 = vcmask 1040384
        %v170 = vsel %vm169, %v160, %v167
        %v171 = vadd.f32 %v168, %v170
        %172 = vst [vmem:[%s148] sm:$0x3] %v171
        %s173 = sand.u32 %s66, 1
        %s174 = scalar_lea.sflag [#allocation4], %s173
        %s175 = sand.u32 %s66, 1
        %s176 = smul.addr %s175, 2
        %s177 = scalar_lea.vmem [#allocation5], %s176
        // Predicated region
        $region33: #{tpu_custom_call.1} parent=23 // pred_check
          %p178 = pneg %p76
        $region34: #{tpu_custom_call.1} parent=23 // pred_check_branch
          %180 = sbr.rel (%p178) target = $region36
        $region35: #{tpu_custom_call.1} parent=23 // pred_region
          %182 = vsyncadd %s174, 0
          %s183 = smul.addr %s22, 2
          %s184 = scalar_lea.hbm %s1, %s183
          %s186 = sshll.u32 %s177, 4
          %s187 = int_to_ptr.vmem [resolvable:$true] %s186
          %s188 = sshll.u32 %s184, 4
          %s189 = int_to_ptr.hbm [resolvable:$true] %s188
          %191 = dma.vmem_to_hbm [thread:$0]  %s187, 32, %s189, %s174
        $region36: #{tpu_custom_call.1} parent=23 // pred_fallthru
          _
      $region24: #{tpu_custom_call.1} parent=5 // pred_fallthru
        _
      %p192 = scmp.le.s32.totalorder 2, %s13
      // Predicated region
      $region37: #{tpu_custom_call.1} parent=5 // pred_check
        %p193 = pneg %p192
      $region38: #{tpu_custom_call.1} parent=5 // pred_check_branch
        %195 = sbr.rel (%p193) target = $region40
      $region39: #{tpu_custom_call.1} parent=5 // pred_region
        %s196 = ssub.s32 %s13, 2
        // Predicated region
        $region41: #{tpu_custom_call.1} parent=39 // pred_check
          %p197 = pneg %p82
        $region42: #{tpu_custom_call.1} parent=39 // pred_check_branch
          %199 = sbr.rel (%p197) target = $region44
        $region43: #{tpu_custom_call.1} parent=39 // pred_region
          %s200 = sand.u32 %s67, 1
          %s201 = scalar_lea.sflag [#allocation4], %s200
          %s202 = sand.u32 %s67, 1
          %s203 = smul.addr %s202, 2
          %s204 = scalar_lea.vmem [#allocation5], %s203
          %206 = dma.done %s201, 32
        $region44: #{tpu_custom_call.1} parent=39 // pred_fallthru
          _
      $region40: #{tpu_custom_call.1} parent=5 // pred_fallthru
        _
    $region6: #{tpu_custom_call.1} parent=1 // loop_footer
      %s17 = sadd.s32 1, %s13
    $region7: #{tpu_custom_call.1} parent=1 // loop_footer_branch
      %12 = sbr.rel target = $region3
    $region8: #{tpu_custom_call.1} parent=1 // loop_exit
      _
    %207 = vsyncpa [#allocation3], 1
    %s208 = scalar_lea.sflag [#allocation3], 1
    %209 = vsyncpa %s208, 1
    %210 = vsyncpa [#allocation4], 1
    %s211 = scalar_lea.sflag [#allocation4], 1
    %212 = vsyncpa %s211, 1

</llo_original>
